<compile_context>
chip_gen: v7x
topology: tpu7x:2x2x1
jax: 0.10.0
libtpu: 0.0.40
codegen_flags: <defaults>
</compile_context>

<pallas_src>
import functools
import math

import jax
import jax.numpy as jnp
from jax.experimental import pallas as pl
from jax.experimental.pallas import tpu as pltpu


def _round_up(x, m):
    return ((x + m - 1) // m) * m


def _mlp_kernel(x_ref, w1_ref, b1_ref, wenc_ref, benc_ref, w3_ref, b3_ref,
                o_ref, *, num_enc):
    # first_layer: Linear (+ identity norm) + ReLU.  bf16 matmul, f32 accumulate.
    x = x_ref[...].astype(jnp.bfloat16)
    h = jnp.dot(x, w1_ref[...], preferred_element_type=jnp.float32)
    h = jnp.maximum(h + b1_ref[...], 0.0)

    def enc_layer(h, w, b):
        hh = jnp.dot(h.astype(jnp.bfloat16), w, preferred_element_type=jnp.float32)
        return jnp.maximum(hh + b, 0.0)

    # encoder: (num_layers - 2) x (Linear + ReLU), weights stacked on axis 0.
    if num_enc > 0:
        if num_enc <= 4:
            for l in range(num_enc):          # small: fully unrolled
                h = enc_layer(h, wenc_ref[l], benc_ref[l])
        else:                                  # deep: keep code size / vregs bounded
            h = jax.lax.fori_loop(
                0, num_enc, lambda l, h: enc_layer(h, wenc_ref[l], benc_ref[l]), h)

    # last_layer: plain Linear (no activation); output width padded to 128-lane
    # multiple for lane-dense stores.
    out = jnp.dot(h.astype(jnp.bfloat16), w3_ref[...],
                  preferred_element_type=jnp.float32) + b3_ref[...]
    o_ref[...] = out.astype(o_ref.dtype)


def batch_mlp_pallas(x, params, num_layers, *, tm=512):
    """x: (B, N, d_in) float32 -> (B, N, last_op_size) float32."""
    w1, b1, wenc, benc, w3, b3 = params
    B, N, d_in = x.shape
    op_size = w1.shape[1]
    last_op_size = w3.shape[1]
    num_enc = num_layers - 2
    num_enc_stack = wenc.shape[0]
    assert num_enc_stack >= max(num_enc, 1)

    # bf16 weights for the MXU (halves HBM traffic and resident VMEM); f32 biases.
    w1 = w1.astype(jnp.bfloat16)
    wenc = wenc.astype(jnp.bfloat16)
    w3 = w3.astype(jnp.bfloat16)
    b1 = b1.astype(jnp.float32)
    benc = benc.astype(jnp.float32)
    b3 = b3.astype(jnp.float32)

    # Lane-dense output: pad last-layer width to a multiple of 128.
    last_pad = _round_up(last_op_size, 128)
    if last_pad != last_op_size:
        w3 = jnp.pad(w3, ((0, 0), (0, last_pad - last_op_size)))
        b3 = jnp.pad(b3, ((0, 0), (0, last_pad - last_op_size)))

    # Row tiling: pad rows to a tile multiple instead of asserting divisibility.
    M = B * N
    tm_eff = min(tm, _round_up(M, 8))
    M_pad = _round_up(M, tm_eff)
    x2 = x.reshape(M, d_in)
    if M_pad != M:
        x2 = jnp.pad(x2, ((0, M_pad - M), (0, 0)))

    grid = (M_pad // tm_eff,)
    kernel = functools.partial(_mlp_kernel, num_enc=num_enc)

    # VMEM budget: 2x-buffered x/out tiles + (2x-buffered) weights/biases +
    # live intermediate h, with 2x headroom, capped below v7x's 64 MiB.
    est = (2 * (tm_eff * d_in * 4 + tm_eff * last_pad * 4)
           + 2 * 2 * (d_in * op_size + num_enc_stack * op_size * op_size
                      + op_size * last_pad)
           + 2 * 4 * (op_size + num_enc_stack * op_size + last_pad)
           + 2 * tm_eff * op_size * 4)
    vmem_limit = int(min(max(2 * est, 32 * 1024 * 1024), 48 * 1024 * 1024))

    flops = 2 * M_pad * (d_in * op_size + num_enc * op_size * op_size
                         + op_size * last_pad)
    bytes_accessed = (x2.size * 4 + M_pad * last_pad * 4
                      + (w1.size + wenc.size + w3.size) * 2
                      + (b1.size + benc.size + b3.size) * 4)

    out2 = pl.pallas_call(
        kernel,
        out_shape=jax.ShapeDtypeStruct((M_pad, last_pad), x.dtype),
        grid_spec=pltpu.PrefetchScalarGridSpec(
            num_scalar_prefetch=0,
            grid=grid,
            in_specs=[
                pl.BlockSpec((tm_eff, d_in), lambda i: (i, 0)),                      # x rows
                pl.BlockSpec((d_in, op_size), lambda i: (0, 0)),                     # W1 (bf16)
                pl.BlockSpec((1, op_size), lambda i: (0, 0)),                        # b1
                pl.BlockSpec((num_enc_stack, op_size, op_size), lambda i: (0, 0, 0)),# enc W stack
                pl.BlockSpec((num_enc_stack, 1, op_size), lambda i: (0, 0, 0)),      # enc b stack
                pl.BlockSpec((op_size, last_pad), lambda i: (0, 0)),                 # W_last (padded)
                pl.BlockSpec((1, last_pad), lambda i: (0, 0)),                       # b_last (padded)
            ],
            out_specs=pl.BlockSpec((tm_eff, last_pad), lambda i: (i, 0)),
        ),
        compiler_params=pltpu.CompilerParams(
            dimension_semantics=("parallel",),
            vmem_limit_bytes=vmem_limit),
        cost_estimate=pl.CostEstimate(
            flops=flops, transcendentals=0, bytes_accessed=bytes_accessed),
    )(x2, w1, b1, wenc, benc, w3, b3)

    return out2[:M, :last_op_size].reshape(B, N, last_op_size)


def init_params(key, in_size, op_size, last_op_size, num_layers):
    """PyTorch-nn.Linear-style init, weights stored as (fan_in, fan_out)."""
    num_enc = num_layers - 2
    keys = jax.random.split(key, 6)

    def linear(kw, kb, fan_in, fan_out, stack=None):
        bound = 1.0 / math.sqrt(fan_in)
        wshape = (fan_in, fan_out) if stack is None else (stack, fan_in, fan_out)
        bshape = (1, fan_out) if stack is None else (stack, 1, fan_out)
        w = jax.random.uniform(kw, wshape, jnp.float32, -bound, bound)
        b = jax.random.uniform(kb, bshape, jnp.float32, -bound, bound)
        return w, b

    w1, b1 = linear(keys[0], keys[1], in_size, op_size)
    wenc, benc = linear(keys[2], keys[3], op_size, op_size, stack=max(num_enc, 1))
    if num_enc == 0:
        # dummy (unused) stack so the kernel signature stays uniform
        wenc = jnp.zeros_like(wenc)
        benc = jnp.zeros_like(benc)
    w3, b3 = linear(keys[4], keys[5], op_size, last_op_size)
    return (w1, b1, wenc, benc, w3, b3)


def batch_mlp_reference(x, params, num_layers):
    """Pure-JAX reference with the same bf16-matmul / f32-accumulate semantics."""
    w1, b1, wenc, benc, w3, b3 = params
    num_enc = num_layers - 2
    bf = jnp.bfloat16
    h = jnp.einsum("bnd,df->bnf", x.astype(bf), w1.astype(bf),
                   preferred_element_type=jnp.float32)
    h = jnp.maximum(h + b1[0], 0.0)
    for l in range(num_enc):
        h = jnp.einsum("bnd,df->bnf", h.astype(bf), wenc[l].astype(bf),
                       preferred_element_type=jnp.float32)
        h = jnp.maximum(h + benc[l, 0], 0.0)
    return jnp.einsum("bnd,df->bnf", h.astype(bf), w3.astype(bf),
                      preferred_element_type=jnp.float32) + b3[0]


if __name__ == "__main__":
    # batch_MLP(in_size=4, op_size=32, last_op_size=16, num_layers=3)
    B, N = 2, 8
    in_size, op_size, last_op_size, num_layers = 4, 32, 16, 3

    key = jax.random.PRNGKey(0)
    kx, kp = jax.random.split(key)
    x = jax.random.normal(kx, (B, N, in_size), dtype=jnp.float32)
    params = init_params(kp, in_size, op_size, last_op_size, num_layers)

    out = batch_mlp_pallas(x, params, num_layers)
    out = jax.block_until_ready(out)

    ref = batch_mlp_reference(x, params, num_layers)
    assert out.shape == (B, N, last_op_size)
    assert jnp.allclose(out, ref, atol=5e-3, rtol=5e-3), \
        float(jnp.max(jnp.abs(out - ref)))

    print("KERNEL_OK")
</pallas_src>

<mosaic_0001>
module attributes {stable_mosaic.version = 11 : i64} {
  func.func @_mlp_kernel(%arg0: i32, %arg1: memref<16x4xf32, #tpu.memory_space<vmem>>, %arg2: memref<4x32xbf16, #tpu.memory_space<vmem>>, %arg3: memref<1x32xf32, #tpu.memory_space<vmem>>, %arg4: memref<1x32x32xbf16, #tpu.memory_space<vmem>>, %arg5: memref<1x1x32xf32, #tpu.memory_space<vmem>>, %arg6: memref<32x128xbf16, #tpu.memory_space<vmem>>, %arg7: memref<1x128xf32, #tpu.memory_space<vmem>>, %arg8: memref<16x128xf32, #tpu.memory_space<vmem>>) attributes {dimension_semantics = [#tpu.dimension_semantics<parallel>], iteration_bounds = array<i64: 1>, scalar_prefetch = 0 : i64, scratch_operands = 0 : i64, tpu.core_type = #tpu.core_type<tc>, window_params = [{transform_indices = @transform_0, window_bounds = array<i64: 16, 4>}, {pipeline_mode = #tpu.pipeline_mode<synchronous>, transform_indices = @transform_1, window_bounds = array<i64: 4, 32>}, {pipeline_mode = #tpu.pipeline_mode<synchronous>, transform_indices = @transform_2, window_bounds = array<i64: 1, 32>}, {pipeline_mode = #tpu.pipeline_mode<synchronous>, transform_indices = @transform_3, window_bounds = array<i64: 1, 32, 32>}, {pipeline_mode = #tpu.pipeline_mode<synchronous>, transform_indices = @transform_4, window_bounds = array<i64: 1, 1, 32>}, {pipeline_mode = #tpu.pipeline_mode<synchronous>, transform_indices = @transform_5, window_bounds = array<i64: 32, 128>}, {pipeline_mode = #tpu.pipeline_mode<synchronous>, transform_indices = @transform_6, window_bounds = array<i64: 1, 128>}, {transform_indices = @transform_7, window_bounds = array<i64: 16, 128>}]} {
    %c0 = arith.constant 0 : index
    %c0_0 = arith.constant 0 : index
    %0 = vector.load %arg1[%c0, %c0_0] : memref<16x4xf32, #tpu.memory_space<vmem>>, vector<16x4xf32>
    %1 = arith.truncf %0 : vector<16x4xf32> to vector<16x4xbf16>
    %c0_1 = arith.constant 0 : index
    %c0_2 = arith.constant 0 : index
    %2 = vector.load %arg2[%c0_1, %c0_2] : memref<4x32xbf16, #tpu.memory_space<vmem>>, vector<4x32xbf16>
    %cst = arith.constant dense<0.000000e+00> : vector<16x32xf32>
    %3 = tpu.matmul %1, %2, %cst {dimension_numbers = #tpu.dot_dimension_numbers<[1], [0], [0], [1], [0, 0, 1, 1], [], []>} : vector<16x4xbf16>, vector<4x32xbf16>, vector<16x32xf32> -> vector<16x32xf32>
    %c0_3 = arith.constant 0 : index
    %c0_4 = arith.constant 0 : index
    %4 = vector.load %arg3[%c0_3, %c0_4] : memref<1x32xf32, #tpu.memory_space<vmem>>, vector<1x32xf32>
    %5 = vector.broadcast %4 : vector<1x32xf32> to vector<16x32xf32>
    %6 = arith.addf %3, %5 : vector<16x32xf32>
    %cst_5 = arith.constant 0.000000e+00 : f32
    %7 = vector.broadcast %cst_5 : f32 to vector<16x32xf32>
    %8 = arith.maximumf %6, %7 : vector<16x32xf32>
    %c0_6 = arith.constant 0 : index
    %c0_7 = arith.constant 0 : index
    %c0_8 = arith.constant 0 : index
    %9 = vector.load %arg4[%c0_6, %c0_7, %c0_8] : memref<1x32x32xbf16, #tpu.memory_space<vmem>>, vector<1x32x32xbf16>
    %10 = vector.shape_cast %9 : vector<1x32x32xbf16> to vector<32x32xbf16>
    %c0_9 = arith.constant 0 : index
    %c0_10 = arith.constant 0 : index
    %c0_11 = arith.constant 0 : index
    %11 = vector.load %arg5[%c0_9, %c0_10, %c0_11] : memref<1x1x32xf32, #tpu.memory_space<vmem>>, vector<1x1x32xf32>
    %12 = vector.shape_cast %11 : vector<1x1x32xf32> to vector<1x32xf32>
    %13 = arith.truncf %8 : vector<16x32xf32> to vector<16x32xbf16>
    %cst_12 = arith.constant dense<0.000000e+00> : vector<16x32xf32>
    %14 = tpu.matmul %13, %10, %cst_12 {dimension_numbers = #tpu.dot_dimension_numbers<[1], [0], [0], [1], [0, 0, 1, 1], [], []>} : vector<16x32xbf16>, vector<32x32xbf16>, vector<16x32xf32> -> vector<16x32xf32>
    %15 = vector.broadcast %12 : vector<1x32xf32> to vector<16x32xf32>
    %16 = arith.addf %14, %15 : vector<16x32xf32>
    %cst_13 = arith.constant 0.000000e+00 : f32
    %17 = vector.broadcast %cst_13 : f32 to vector<16x32xf32>
    %18 = arith.maximumf %16, %17 : vector<16x32xf32>
    %19 = arith.truncf %18 : vector<16x32xf32> to vector<16x32xbf16>
    %c0_14 = arith.constant 0 : index
    %c0_15 = arith.constant 0 : index
    %20 = vector.load %arg6[%c0_14, %c0_15] : memref<32x128xbf16, #tpu.memory_space<vmem>>, vector<32x128xbf16>
    %cst_16 = arith.constant dense<0.000000e+00> : vector<16x128xf32>
    %21 = tpu.matmul %19, %20, %cst_16 {dimension_numbers = #tpu.dot_dimension_numbers<[1], [0], [0], [1], [0, 0, 1, 1], [], []>} : vector<16x32xbf16>, vector<32x128xbf16>, vector<16x128xf32> -> vector<16x128xf32>
    %c0_17 = arith.constant 0 : index
    %c0_18 = arith.constant 0 : index
    %22 = vector.load %arg7[%c0_17, %c0_18] : memref<1x128xf32, #tpu.memory_space<vmem>>, vector<1x128xf32>
    %23 = vector.broadcast %22 : vector<1x128xf32> to vector<16x128xf32>
    %24 = arith.addf %21, %23 : vector<16x128xf32>
    %c0_19 = arith.constant 0 : index
    %c0_20 = arith.constant 0 : index
    %25 = vector.load %arg8[%c0_19, %c0_20] : memref<16x128xf32, #tpu.memory_space<vmem>>, vector<16x128xf32>
    tpu.vector_store %arg8[%c0_19, %c0_20], %24 {strides = array<i32>} : memref<16x128xf32, #tpu.memory_space<vmem>>, vector<16x128xf32>,
    return
  }
  func.func @transform_0(%arg0: i32) -> (i32, i32) {
    %c0_i32 = arith.constant 0 : i32
    %c0_i32_0 = arith.constant 0 : i32
    return %arg0, %c0_i32 : i32, i32
  }
  func.func @transform_1(%arg0: i32) -> (i32, i32) {
    %c0_i32 = arith.constant 0 : i32
    %c0_i32_0 = arith.constant 0 : i32
    %c0_i32_1 = arith.constant 0 : i32
    return %c0_i32, %c0_i32_0 : i32, i32
  }
  func.func @transform_2(%arg0: i32) -> (i32, i32) {
    %c0_i32 = arith.constant 0 : i32
    %c0_i32_0 = arith.constant 0 : i32
    %c0_i32_1 = arith.constant 0 : i32
    return %c0_i32, %c0_i32_0 : i32, i32
  }
  func.func @transform_3(%arg0: i32) -> (i32, i32, i32) {
    %c0_i32 = arith.constant 0 : i32
    %c0_i32_0 = arith.constant 0 : i32
    %c0_i32_1 = arith.constant 0 : i32
    %c0_i32_2 = arith.constant 0 : i32
    return %c0_i32, %c0_i32_0, %c0_i32_1 : i32, i32, i32
  }
  func.func @transform_4(%arg0: i32) -> (i32, i32, i32) {
    %c0_i32 = arith.constant 0 : i32
    %c0_i32_0 = arith.constant 0 : i32
    %c0_i32_1 = arith.constant 0 : i32
    %c0_i32_2 = arith.constant 0 : i32
    return %c0_i32, %c0_i32_0, %c0_i32_1 : i32, i32, i32
  }
  func.func @transform_5(%arg0: i32) -> (i32, i32) {
    %c0_i32 = arith.constant 0 : i32
    %c0_i32_0 = arith.constant 0 : i32
    %c0_i32_1 = arith.constant 0 : i32
    return %c0_i32, %c0_i32_0 : i32, i32
  }
  func.func @transform_6(%arg0: i32) -> (i32, i32) {
    %c0_i32 = arith.constant 0 : i32
    %c0_i32_0 = arith.constant 0 : i32
    %c0_i32_1 = arith.constant 0 : i32
    return %c0_i32, %c0_i32_0 : i32, i32
  }
  func.func @transform_7(%arg0: i32) -> (i32, i32) {
    %c0_i32 = arith.constant 0 : i32
    %c0_i32_0 = arith.constant 0 : i32
    return %arg0, %c0_i32 : i32, i32
  }
}

</mosaic_0001>

<llo_original>
// kernel: tpu_custom_call.1
$region0: #{tpu_custom_call.1}
  #allocation0 [shape = 'u32[]', space=smem, size = 0x4, offset = 0x4, fixed_abs, tag = 'smem constant byte address 0x4 - core index']
  #allocation1 [shape = 'u32[144,128]{1,0:T(1,128)}', space=vmem, size = 0x12000, scoped, tag = 'internal scratch']
  %s0 = inlined_call_operand.vmem [shape: f32[16,4], index: 0, kind: input, shape index: {}]
  %s1 = inlined_call_operand.vmem [shape: bf16[4,32], index: 1, kind: input, shape index: {}]
  %s2 = inlined_call_operand.vmem [shape: f32[1,32], index: 2, kind: input, shape index: {}]
  %s3 = inlined_call_operand.vmem [shape: bf16[1,32,32], index: 3, kind: input, shape index: {}]
  %s4 = inlined_call_operand.hbm [shape: f32[1,1,32], index: 4, kind: input, shape index: {}]
  %s5 = inlined_call_operand.vmem [shape: bf16[32,128], index: 5, kind: input, shape index: {}]
  %s6 = inlined_call_operand.vmem [shape: f32[1,128], index: 6, kind: input, shape index: {}]
  %s7 = inlined_call_operand.hbm [shape: f32[16,128], index: 7, kind: output, shape index: {}]
  %s8 = sld [smem:[#allocation0]]
  $region42: #{tpu_custom_call.1} parent=0
    _
  %s10 = ssub.s32 1, %s8
  %s11 = scalar_select 0, %s10, %s8
  $region1: #{tpu_custom_call.1} parent=0
    #allocation2 [shape = 'u8[512]{0}', space=vmem, size = 0x400, scoped, tag = 'input window, operand 4, single buffered']
    #allocation3 [shape = 's32[1]{0}', space=sflag, size = 0x4, scoped, tag = 'scoped memory for tpu_custom_call.1']
    #allocation4 [shape = 's32[1]{0}', space=sflag, size = 0x4, scoped, tag = 'scoped memory for tpu_custom_call.1']
    #allocation5 [shape = 'u8[8192]{0}', space=vmem, size = 0x2000, scoped, tag = 'output window, operand 0, single buffered']
    %12 = vsyncpa [#allocation3], 0
    %13 = vsyncpa [#allocation4], 0
    // Predicated region
    $region2: #{tpu_custom_call.1} parent=1 // pred_check
      _
    $region3: #{tpu_custom_call.1} parent=1 // pred_check_branch
      %15 = sbr.rel (0) target = $region5
    $region4: #{tpu_custom_call.1} parent=1 // pred_region
      _
    $region5: #{tpu_custom_call.1} parent=1 // pred_fallthru
      _
    // Predicated region
    $region6: #{tpu_custom_call.1} parent=1 // pred_check
      _
    $region7: #{tpu_custom_call.1} parent=1 // pred_check_branch
      %17 = sbr.rel (0) target = $region9
    $region8: #{tpu_custom_call.1} parent=1 // pred_region
      _
    $region9: #{tpu_custom_call.1} parent=1 // pred_fallthru
      _
    // Predicated region
    $region10: #{tpu_custom_call.1} parent=1 // pred_check
      _
    $region11: #{tpu_custom_call.1} parent=1 // pred_check_branch
      %19 = sbr.rel (0) target = $region13
    $region12: #{tpu_custom_call.1} parent=1 // pred_region
      _
    $region13: #{tpu_custom_call.1} parent=1 // pred_fallthru
      _
    // Predicated region
    $region14: #{tpu_custom_call.1} parent=1 // pred_check
      _
    $region15: #{tpu_custom_call.1} parent=1 // pred_check_branch
      %21 = sbr.rel (0) target = $region17
    $region16: #{tpu_custom_call.1} parent=1 // pred_region
      _
    $region17: #{tpu_custom_call.1} parent=1 // pred_fallthru
      _
    // Predicated region
    $region18: #{tpu_custom_call.1} parent=1 // pred_check
      _
    $region19: #{tpu_custom_call.1} parent=1 // pred_check_branch
      %23 = sbr.rel (0) target = $region21
    $region20: #{tpu_custom_call.1} parent=1 // pred_region
      %s25 = ssub.s32 16, 16
      %26 = vsyncadd [#allocation3], %s25
      %s28 = sshll.u32 [#allocation2], 4
      %s29 = int_to_ptr.vmem [resolvable:$true] %s28
      %31 = dma.hbm_to_vmem [thread:$0]  %s4, 16, %s29, [#allocation3]
    $region21: #{tpu_custom_call.1} parent=1 // pred_fallthru
      _
    // Predicated region
    $region22: #{tpu_custom_call.1} parent=1 // pred_check
      _
    $region23: #{tpu_custom_call.1} parent=1 // pred_check_branch
      %33 = sbr.rel (0) target = $region25
    $region24: #{tpu_custom_call.1} parent=1 // pred_region
      _
    $region25: #{tpu_custom_call.1} parent=1 // pred_fallthru
      _
    // Predicated region
    $region26: #{tpu_custom_call.1} parent=1 // pred_check
      _
    $region27: #{tpu_custom_call.1} parent=1 // pred_check_branch
      %35 = sbr.rel (0) target = $region29
    $region28: #{tpu_custom_call.1} parent=1 // pred_region
      _
    $region29: #{tpu_custom_call.1} parent=1 // pred_fallthru
      _
    // Predicated region
    $region30: #{tpu_custom_call.1} parent=1 // pred_check
      _
    $region31: #{tpu_custom_call.1} parent=1 // pred_check_branch
      %37 = sbr.rel (0) target = $region33
    $region32: #{tpu_custom_call.1} parent=1 // pred_region
      %38 = dma.done [#allocation3], 16
    $region33: #{tpu_custom_call.1} parent=1 // pred_fallthru
      _
    %v40 = vld [vmem:[%s0] sm:$0xff]
    %v41 = vld [vmem:[%s0 + $0x8] sm:$0xff]
    %v42 = vpack.c.bf16 %v41, %v40
    %v43 = vld [vmem:[%s1] sm:$0x3]
    %v44 = vld [vmem:[%s2] sm:$0x1]
    %v46 = vlaneseq
    %v47 = vshrl.u32 %v46, 7
    %v48 = vsub.s32 0, %v47
    %v49 = vrot.slane %v44, %v48
    %vm51 = vcmask 31744
    %v53 = vsel %vm51, %v42, 0
    %vm55 = vcmask 1041408
    %v57 = vsel %vm55, %v43, 0
    %59 = vmatprep.subr.bf16.mxu0 0
    %60 = vmatpush1.bf16.msra.mxu0 %v57
    %61 = vmatprep.subr.bf16.mxu0 0
    %62 = vmatpush1.bf16.msra.mxu0 0
    %63 = vmatprep.subr.bf16.mxu0 0
    %64 = vmatpush1.bf16.msra.mxu0 0
    %65 = vmatprep.subr.bf16.mxu0 0
    %66 = vmatpush1.bf16.msra.mxu0 0
    %67 = vmatprep.subr.bf16.mxu0 0
    %68 = vmatpush1.bf16.msra.mxu0 0
    %69 = vmatprep.subr.bf16.mxu0 0
    %70 = vmatpush1.bf16.msra.mxu0 0
    %71 = vmatprep.subr.bf16.mxu0 0
    %72 = vmatpush1.bf16.msra.mxu0 0
    %73 = vmatprep.subr.bf16.mxu0 0
    %74 = vmatpush1.bf16.msra.mxu0 0
    %75 = vmatprep.subr.bf16.mxu0 0
    %76 = vmatpush1.bf16.msra.mxu0 0
    %77 = vmatprep.subr.bf16.mxu0 0
    %78 = vmatpush1.bf16.msra.mxu0 0
    %79 = vmatprep.subr.bf16.mxu0 0
    %80 = vmatpush1.bf16.msra.mxu0 0
    %81 = vmatprep.subr.bf16.mxu0 0
    %82 = vmatpush1.bf16.msra.mxu0 0
    %83 = vmatprep.subr.bf16.mxu0 0
    %84 = vmatpush1.bf16.msra.mxu0 0
    %85 = vmatprep.subr.bf16.mxu0 0
    %86 = vmatpush1.bf16.msra.mxu0 0
    %87 = vmatprep.subr.bf16.mxu0 0
    %88 = vmatpush1.bf16.msra.mxu0 0
    %89 = vmatprep.subr.bf16.mxu0 0
    %90 = vmatpush1.bf16.msra.mxu0 0
    %91 = vmatprep.mubr.bf16.mxu0 0
    %92 = vmatmul.mubr.bf16.gmra.mrb[0].mxu0 %v53
    %v93 = vpop.f32.mrb[0].mxu0
    %v94 = vadd.f32 %v49, %v93
    %v95 = vpop.f32.mrb[0].mxu0
    %v96 = vpop.f32.mrb[0].mxu0
    %v97 = vadd.f32 %v49, %v96
    %v98 = vpop.f32.mrb[0].mxu0
    %99 = vdwg.mxu0
    %v100 = vmax.f32 %v94, 0.0
    %v101 = vmax.f32 %v97, 0.0
    %v102 = vld [vmem:[%s3] sm:$0xf]
    %v103 = vld [vmem:[%s3 + $0x4] sm:$0xf]
    %v104 = vld [vmem:[%s3 + $0x8] sm:$0xf]
    %v105 = vld [vmem:[%s3 + $0xc] sm:$0xf]
    %v106 = vld [vmem:[#allocation2] sm:$0x1]
    %v107 = vpack.c.bf16 %v101, %v100
    %v109 = vlaneseq
    %v110 = vshrl.u32 %v109, 7
    %v111 = vsub.s32 0, %v110
    %v112 = vrot.slane %v106, %v111
    %v118 = vunpack.c.l.b16 %v102
    %v119 = vunpack.c.l.b16 %v103
    %v120 = vunpack.c.l.b16 %v104
    %v121 = vunpack.c.l.b16 %v105
    %v122 = vpack.c.b16 %v119, %v118
    %v123 = vpack.c.b16 %v121, %v120
    %vm126 = vcmask 261120
    %v128 = vsel %vm126, %v107, 0
    %130 = vmatprep.subr.bf16.mxu0 0
    %131 = vmatpush1.bf16.msra.mxu0 %v122
    %132 = vmatprep.subr.bf16.mxu0 0
    %133 = vmatpush1.bf16.msra.mxu0 %v123
    %134 = vmatprep.subr.bf16.mxu0 0
    %135 = vmatpush1.bf16.msra.mxu0 0
    %136 = vmatprep.subr.bf16.mxu0 0
    %137 = vmatpush1.bf16.msra.mxu0 0
    %138 = vmatprep.subr.bf16.mxu0 0
    %139 = vmatpush1.bf16.msra.mxu0 0
    %140 = vmatprep.subr.bf16.mxu0 0
    %141 = vmatpush1.bf16.msra.mxu0 0
    %142 = vmatprep.subr.bf16.mxu0 0
    %143 = vmatpush1.bf16.msra.mxu0 0
    %144 = vmatprep.subr.bf16.mxu0 0
    %145 = vmatpush1.bf16.msra.mxu0 0
    %146 = vmatprep.subr.bf16.mxu0 0
    %147 = vmatpush1.bf16.msra.mxu0 0
    %148 = vmatprep.subr.bf16.mxu0 0
    %149 = vmatpush1.bf16.msra.mxu0 0
    %150 = vmatprep.subr.bf16.mxu0 0
    %151 = vmatpush1.bf16.msra.mxu0 0
    %152 = vmatprep.subr.bf16.mxu0 0
    %153 = vmatpush1.bf16.msra.mxu0 0
    %154 = vmatprep.subr.bf16.mxu0 0
    %155 = vmatpush1.bf16.msra.mxu0 0
    %156 = vmatprep.subr.bf16.mxu0 0
    %157 = vmatpush1.bf16.msra.mxu0 0
    %158 = vmatprep.subr.bf16.mxu0 0
    %159 = vmatpush1.bf16.msra.mxu0 0
    %160 = vmatprep.subr.bf16.mxu0 0
    %161 = vmatpush1.bf16.msra.mxu0 0
    %162 = vmatprep.mubr.bf16.mxu0 0
    %163 = vmatmul.mubr.bf16.gmra.mrb[0].mxu0 %v128
    %v164 = vpop.f32.mrb[0].mxu0
    %v165 = vadd.f32 %v112, %v164
    %v166 = vpop.f32.mrb[0].mxu0
    %v167 = vpop.f32.mrb[0].mxu0
    %v168 = vadd.f32 %v112, %v167
    %v169 = vpop.f32.mrb[0].mxu0
    %170 = vdwg.mxu0
    %v171 = vmax.f32 %v165, 0.0
    %v172 = vmax.f32 %v168, 0.0
    %v173 = vpack.c.bf16 %v172, %v171
    %v174 = vld [vmem:[%s5] sm:$0xf]
    %v175 = vld [vmem:[%s5 + $0x4] sm:$0xf]
    %v176 = vld [vmem:[%s5 + $0x8] sm:$0xf]
    %v177 = vld [vmem:[%s5 + $0xc] sm:$0xf]
    %v178 = vld [vmem:[%s6] sm:$0x1]
    %v180 = vlaneseq
    %v181 = vshrl.u32 %v180, 7
    %v182 = vsub.s32 0, %v181
    %v183 = vrot.slane %v178, %v182
    %v189 = vunpack.c.l.b16 %v174
    %v190 = vunpack.c.l.b16 %v175
    %v191 = vunpack.c.l.b16 %v176
    %v192 = vunpack.c.l.b16 %v177
    %v193 = vpack.c.b16 %v190, %v189
    %v194 = vpack.c.b16 %v192, %v191
    %v198 = vsel %vm126, %v173, 0
    %200 = vmatprep.subr.bf16.mxu0 0
    %201 = vmatpush1.bf16.msra.mxu0 %v193
    %202 = vmatprep.subr.bf16.mxu0 0
    %203 = vmatpush1.bf16.msra.mxu0 %v194
    %204 = vmatprep.subr.bf16.mxu0 0
    %205 = vmatpush1.bf16.msra.mxu0 0
    %206 = vmatprep.subr.bf16.mxu0 0
    %207 = vmatpush1.bf16.msra.mxu0 0
    %208 = vmatprep.subr.bf16.mxu0 0
    %209 = vmatpush1.bf16.msra.mxu0 0
    %210 = vmatprep.subr.bf16.mxu0 0
    %211 = vmatpush1.bf16.msra.mxu0 0
    %212 = vmatprep.subr.bf16.mxu0 0
    %213 = vmatpush1.bf16.msra.mxu0 0
    %214 = vmatprep.subr.bf16.mxu0 0
    %215 = vmatpush1.bf16.msra.mxu0 0
    %216 = vmatprep.subr.bf16.mxu0 0
    %217 = vmatpush1.bf16.msra.mxu0 0
    %218 = vmatprep.subr.bf16.mxu0 0
    %219 = vmatpush1.bf16.msra.mxu0 0
    %220 = vmatprep.subr.bf16.mxu0 0
    %221 = vmatpush1.bf16.msra.mxu0 0
    %222 = vmatprep.subr.bf16.mxu0 0
    %223 = vmatpush1.bf16.msra.mxu0 0
    %224 = vmatprep.subr.bf16.mxu0 0
    %225 = vmatpush1.bf16.msra.mxu0 0
    %226 = vmatprep.subr.bf16.mxu0 0
    %227 = vmatpush1.bf16.msra.mxu0 0
    %228 = vmatprep.subr.bf16.mxu0 0
    %229 = vmatpush1.bf16.msra.mxu0 0
    %230 = vmatprep.subr.bf16.mxu0 0
    %231 = vmatpush1.bf16.msra.mxu0 0
    %232 = vmatprep.mubr.bf16.mxu0 0
    %233 = vmatmul.mubr.bf16.gmra.mrb[0].mxu0 %v198
    %v234 = vpop.f32.mrb[0].mxu0
    %v235 = vadd.f32 %v183, %v234
    %v236 = vpop.f32.mrb[0].mxu0
    %v237 = vpop.f32.mrb[0].mxu0
    %v238 = vadd.f32 %v183, %v237
    %v239 = vpop.f32.mrb[0].mxu0
    %240 = vdwg.mxu0
    %241 = vst [vmem:[#allocation5] sm:$0xff] %v235
    %242 = vst [vmem:[#allocation5 + $0x8] sm:$0xff] %v238
    // Predicated region
    $region34: #{tpu_custom_call.1} parent=1 // pred_check
      _
    $region35: #{tpu_custom_call.1} parent=1 // pred_check_branch
      %244 = sbr.rel (0) target = $region37
    $region36: #{tpu_custom_call.1} parent=1 // pred_region
      %s246 = ssub.s32 256, 256
      %247 = vsyncadd [#allocation4], %s246
      %s248 = sshll.u32 [#allocation5], 4
      %s249 = int_to_ptr.vmem [resolvable:$true] %s248
      %254 = dma.vmem_to_hbm [thread:$0]  %s249, 256, %s7, [#allocation4], 128, 128, 8
    $region37: #{tpu_custom_call.1} parent=1 // pred_fallthru
      _
    // Predicated region
    $region38: #{tpu_custom_call.1} parent=1 // pred_check
      _
    $region39: #{tpu_custom_call.1} parent=1 // pred_check_branch
      %256 = sbr.rel (0) target = $region41
    $region40: #{tpu_custom_call.1} parent=1 // pred_region
      %257 = dma.done [#allocation4], 256
    $region41: #{tpu_custom_call.1} parent=1 // pred_fallthru
      _
    %258 = vsyncpa [#allocation3], 1
    %259 = vsyncpa [#allocation4], 1

</llo_original>
